<compile_context>
chip_gen: v6e
topology: v6e:2x2x1
jax: 0.10.0
libtpu: 0.0.40
codegen_flags: <defaults>
</compile_context>

<pallas_src>
import functools

import jax
import jax.numpy as jnp
from jax.experimental import pallas as pl
from jax.experimental.pallas import tpu as pltpu

LANE = 128        # vreg lane width
SUBLANE = 8       # f32 sublane count
DEFAULT_TILE_B = 1024  # mem-bound regime: large batch tiles amortize the ~0.35us/step overhead


def _round_up(n, m):
    return ((n + m - 1) // m) * m


def _cdiv(a, b):
    return (a + b - 1) // b


def _vmem_capacity_bytes():
    """Per-core VMEM capacity; conservative (v7x = 64 MiB/TC) if the query is unavailable."""
    try:
        return int(pltpu.get_tpu_info().vmem_capacity_bytes)
    except Exception:
        return 64 * 1024 * 1024


def _mlp_kernel(x_ref, w1_ref, b1_ref, w2_ref, b2_ref, w3_ref, b3_ref, o_ref):
    # x streamed in f32 (no wrapper pad/cast HBM round trip); cast to bf16 for the MXU.
    x = x_ref[...].astype(jnp.bfloat16)

    # Layer 1: Linear + ReLU (bf16 MXU, f32 accumulate; elementwise in f32).
    h1 = jnp.dot(x, w1_ref[...], preferred_element_type=jnp.float32) + b1_ref[...]
    h1 = jnp.maximum(h1, 0.0).astype(jnp.bfloat16)

    # Layer 2: Linear + ReLU.
    h2 = jnp.dot(h1, w2_ref[...], preferred_element_type=jnp.float32) + b2_ref[...]
    h2 = jnp.maximum(h2, 0.0).astype(jnp.bfloat16)

    # Layer 3: Linear (true class width, no padded columns).
    logits = jnp.dot(h2, w3_ref[...], preferred_element_type=jnp.float32) + b3_ref[...]

    # Numerically stable softmax over dim=1 with exact f32 normalization (rows sum to 1).
    m = jnp.max(logits, axis=1, keepdims=True)
    e = jnp.exp(logits - m)
    denom = jnp.sum(e, axis=1, keepdims=True)
    o_ref[...] = (e / denom).astype(o_ref.dtype)


@functools.partial(jax.jit, static_argnames=("tile_b",))
def mlp_forward(x, w1, b1, w2, b2, w3, b3, tile_b=DEFAULT_TILE_B):
    batch, in_size = x.shape
    hid1 = w1.shape[1]
    hid2 = w2.shape[1]
    out_size = w3.shape[1]

    # Pad only the hidden (weight-resident, never streamed) dims to full lane width. The streamed
    # x feature dim and the class dim keep their true widths (full-array-dim blocks are legal).
    # TODO(synk): at production hidden sizes on v6e/v7x, pad hidden dims to 256 (2x256^2 MXU) and
    #             consider int8 (v6e) / fp8 (v7x) weights if the kernel becomes compute-bound.
    h1_p = _round_up(hid1, LANE)
    h2_p = _round_up(hid2, LANE)

    # ---- Generation-aware VMEM budget (v7x has only 64 MiB per TensorCore) ----
    # Resident weights are single-buffered (pl.Buffered(1)), so they count once.
    weight_bytes = (in_size * h1_p + h1_p * h2_p + h2_p * out_size) * 2 \
        + (h1_p + h2_p + out_size) * 4
    vmem_cap = _vmem_capacity_bytes()
    budget = int(vmem_cap * 0.75)
    # Per-row live bytes: double-buffered f32 x and out streams + ~3 live f32 intermediates.
    per_row = 2 * 4 * in_size + 2 * 4 * out_size + 3 * 4 * max(h1_p, h2_p, out_size)
    avail = max(budget - weight_bytes, SUBLANE * per_row)
    tb_cap = max(SUBLANE, (avail // per_row) // SUBLANE * SUBLANE)
    tb = max(SUBLANE, min(tile_b, tb_cap))
    # Balance tiles over the batch so round_up(batch, tb) never ~doubles the work
    # (e.g. batch=520, tile_b=512 -> tb=264, batch_p=528 instead of 1024).
    tb = min(tb, _round_up(_cdiv(batch, max(1, _cdiv(batch, tb))), SUBLANE))
    batch_p = _round_up(batch, tb)
    grid_b = batch_p // tb
    # TODO(synk): if weight_bytes exceeds the VMEM budget (huge hidden sizes, esp. v7x 64 MiB),
    #             fall back to a hidden-dim-tiled grid / pltpu.emit_pipeline over weight slabs.

    # Batch-only pad of x (no feature pad, stays f32, cast happens in-kernel). No-op pad when
    # batch is already a multiple of tb.
    x_p = jnp.pad(x, ((0, batch_p - batch), (0, 0)))

    # Weights: bf16 for the MXU, hidden dims zero-padded (padded hidden units are exact zeros
    # after ReLU and contribute nothing downstream). Biases stay f32.
    w1_p = jnp.pad(w1, ((0, 0), (0, h1_p - hid1))).astype(jnp.bfloat16)
    b1_p = jnp.pad(b1.astype(jnp.float32), ((0, 0), (0, h1_p - hid1)))
    w2_p = jnp.pad(w2, ((0, h1_p - hid1), (0, h2_p - hid2))).astype(jnp.bfloat16)
    b2_p = jnp.pad(b2.astype(jnp.float32), ((0, 0), (0, h2_p - hid2)))
    w3_p = jnp.pad(w3, ((0, h2_p - hid2), (0, 0))).astype(jnp.bfloat16)
    b3_p = b3.astype(jnp.float32)

    flops = 2 * batch_p * (in_size * h1_p + h1_p * h2_p + h2_p * out_size)
    transcendentals = batch_p * out_size  # exp
    bytes_accessed = (
        x_p.size * 4
        + (w1_p.size + w2_p.size + w3_p.size) * 2
        + (b1_p.size + b2_p.size + b3_p.size) * 4
        + batch_p * out_size * 4
    )

    resident = pl.Buffered(1)  # constant index_map -> never re-DMA'd; don't double-buffer.

    out = pl.pallas_call(
        _mlp_kernel,
        out_shape=jax.ShapeDtypeStruct((batch_p, out_size), jnp.float32),
        grid=(grid_b,),
        in_specs=[
            # Streaming activations: new block per grid step (double-buffered by Pallas).
            # TODO(synk): on v5e, sweep pipeline_mode=pl.Buffered(3) here if the x DMA is exposed.
            pl.BlockSpec((tb, in_size), lambda i: (i, 0)),
            # Weights / biases: constant block index -> VMEM-resident, single-buffered.
            pl.BlockSpec((in_size, h1_p), lambda i: (0, 0), pipeline_mode=resident),
            pl.BlockSpec((1, h1_p), lambda i: (0, 0), pipeline_mode=resident),
            pl.BlockSpec((h1_p, h2_p), lambda i: (0, 0), pipeline_mode=resident),
            pl.BlockSpec((1, h2_p), lambda i: (0, 0), pipeline_mode=resident),
            pl.BlockSpec((h2_p, out_size), lambda i: (0, 0), pipeline_mode=resident),
            pl.BlockSpec((1, out_size), lambda i: (0, 0), pipeline_mode=resident),
        ],
        out_specs=pl.BlockSpec((tb, out_size), lambda i: (i, 0)),
        compiler_params=pltpu.CompilerParams(
            dimension_semantics=("parallel",),                    # megacore sharding on v7x
            vmem_limit_bytes=int(min(budget, 100 * 1024 * 1024)),  # ~0.75 * per-core capacity
        ),
        cost_estimate=pl.CostEstimate(
            flops=flops,
            transcendentals=transcendentals,
            bytes_accessed=bytes_accessed,
        ),
    )(x_p, w1_p, b1_p, w2_p, b2_p, w3_p, b3_p)

    return out[:batch, :]


def init_params(key, input_size, hidden_size, output_size):
    """Deterministic init mimicking nn.Linear's U(-1/sqrt(fan_in), 1/sqrt(fan_in))."""
    ks = jax.random.split(key, 6)

    def linear(kw, kb, fan_in, fan_out):
        bound = 1.0 / jnp.sqrt(fan_in)
        w = jax.random.uniform(kw, (fan_in, fan_out), jnp.float32, -bound, bound)
        b = jax.random.uniform(kb, (1, fan_out), jnp.float32, -bound, bound)
        return w, b

    w1, b1 = linear(ks[0], ks[1], input_size, hidden_size)
    w2, b2 = linear(ks[2], ks[3], hidden_size, hidden_size)
    w3, b3 = linear(ks[4], ks[5], hidden_size, output_size)
    return w1, b1, w2, b2, w3, b3


if __name__ == "__main__":
    # Small shapes consistent with the module: x is (batch, input_size).
    batch, input_size, hidden_size, output_size = 8, 16, 32, 8

    key = jax.random.PRNGKey(0)
    k_x, k_p = jax.random.split(key)
    x = jax.random.normal(k_x, (batch, input_size), jnp.float32)
    params = init_params(k_p, input_size, hidden_size, output_size)

    out = mlp_forward(x, *params)
    jax.block_until_ready(out)
    assert out.shape == (batch, output_size)

    # Reference: same forward pass in plain JAX with matching bf16 matmuls / f32 accumulation.
    w1, b1, w2, b2, w3, b3 = params
    xb = x.astype(jnp.bfloat16)
    h1 = jnp.maximum(
        jnp.dot(xb, w1.astype(jnp.bfloat16), preferred_element_type=jnp.float32) + b1, 0.0)
    h2 = jnp.maximum(
        jnp.dot(h1.astype(jnp.bfloat16), w2.astype(jnp.bfloat16),
                preferred_element_type=jnp.float32) + b2, 0.0)
    logits = jnp.dot(h2.astype(jnp.bfloat16), w3.astype(jnp.bfloat16),
                     preferred_element_type=jnp.float32) + b3
    ref = jax.nn.softmax(logits, axis=1)

    assert jnp.allclose(out, ref, atol=2e-3, rtol=2e-2), "mismatch vs reference"
    assert jnp.allclose(jnp.sum(out, axis=1), 1.0, atol=1e-3), "softmax rows must sum to 1"

    print("KERNEL_OK")
</pallas_src>

<mosaic_0001>
module attributes {stable_mosaic.version = 11 : i64} {
  func.func @_mlp_kernel(%arg0: i32, %arg1: memref<8x16xf32, #tpu.memory_space<vmem>>, %arg2: memref<16x128xbf16, #tpu.memory_space<vmem>>, %arg3: memref<1x128xf32, #tpu.memory_space<vmem>>, %arg4: memref<128x128xbf16, #tpu.memory_space<vmem>>, %arg5: memref<1x128xf32, #tpu.memory_space<vmem>>, %arg6: memref<128x8xbf16, #tpu.memory_space<vmem>>, %arg7: memref<1x8xf32, #tpu.memory_space<vmem>>, %arg8: memref<8x8xf32, #tpu.memory_space<vmem>>) attributes {dimension_semantics = [#tpu.dimension_semantics<parallel>], iteration_bounds = array<i64: 1>, scalar_prefetch = 0 : i64, scratch_operands = 0 : i64, tpu.core_type = #tpu.core_type<tc>, window_params = [{transform_indices = @transform_0, window_bounds = array<i64: 8, 16>}, {pipeline_mode = #tpu.pipeline_mode<synchronous>, transform_indices = @transform_1, window_bounds = array<i64: 16, 128>}, {pipeline_mode = #tpu.pipeline_mode<synchronous>, transform_indices = @transform_2, window_bounds = array<i64: 1, 128>}, {pipeline_mode = #tpu.pipeline_mode<synchronous>, transform_indices = @transform_3, window_bounds = array<i64: 128, 128>}, {pipeline_mode = #tpu.pipeline_mode<synchronous>, transform_indices = @transform_4, window_bounds = array<i64: 1, 128>}, {pipeline_mode = #tpu.pipeline_mode<synchronous>, transform_indices = @transform_5, window_bounds = array<i64: 128, 8>}, {pipeline_mode = #tpu.pipeline_mode<synchronous>, transform_indices = @transform_6, window_bounds = array<i64: 1, 8>}, {transform_indices = @transform_7, window_bounds = array<i64: 8, 8>}]} {
    %c0 = arith.constant 0 : index
    %c0_0 = arith.constant 0 : index
    %0 = vector.load %arg1[%c0, %c0_0] : memref<8x16xf32, #tpu.memory_space<vmem>>, vector<8x16xf32>
    %1 = arith.truncf %0 : vector<8x16xf32> to vector<8x16xbf16>
    %c0_1 = arith.constant 0 : index
    %c0_2 = arith.constant 0 : index
    %2 = vector.load %arg2[%c0_1, %c0_2] : memref<16x128xbf16, #tpu.memory_space<vmem>>, vector<16x128xbf16>
    %cst = arith.constant dense<0.000000e+00> : vector<8x128xf32>
    %3 = tpu.matmul %1, %2, %cst {dimension_numbers = #tpu.dot_dimension_numbers<[1], [0], [0], [1], [0, 0, 1, 1], [], []>} : vector<8x16xbf16>, vector<16x128xbf16>, vector<8x128xf32> -> vector<8x128xf32>
    %c0_3 = arith.constant 0 : index
    %c0_4 = arith.constant 0 : index
    %4 = vector.load %arg3[%c0_3, %c0_4] : memref<1x128xf32, #tpu.memory_space<vmem>>, vector<1x128xf32>
    %5 = vector.broadcast %4 : vector<1x128xf32> to vector<8x128xf32>
    %6 = arith.addf %3, %5 : vector<8x128xf32>
    %cst_5 = arith.constant 0.000000e+00 : f32
    %7 = vector.broadcast %cst_5 : f32 to vector<8x128xf32>
    %8 = arith.maximumf %6, %7 : vector<8x128xf32>
    %9 = arith.truncf %8 : vector<8x128xf32> to vector<8x128xbf16>
    %c0_6 = arith.constant 0 : index
    %c0_7 = arith.constant 0 : index
    %10 = vector.load %arg4[%c0_6, %c0_7] : memref<128x128xbf16, #tpu.memory_space<vmem>>, vector<128x128xbf16>
    %cst_8 = arith.constant dense<0.000000e+00> : vector<8x128xf32>
    %11 = tpu.matmul %9, %10, %cst_8 {dimension_numbers = #tpu.dot_dimension_numbers<[1], [0], [0], [1], [0, 0, 1, 1], [], []>} : vector<8x128xbf16>, vector<128x128xbf16>, vector<8x128xf32> -> vector<8x128xf32>
    %c0_9 = arith.constant 0 : index
    %c0_10 = arith.constant 0 : index
    %12 = vector.load %arg5[%c0_9, %c0_10] : memref<1x128xf32, #tpu.memory_space<vmem>>, vector<1x128xf32>
    %13 = vector.broadcast %12 : vector<1x128xf32> to vector<8x128xf32>
    %14 = arith.addf %11, %13 : vector<8x128xf32>
    %cst_11 = arith.constant 0.000000e+00 : f32
    %15 = vector.broadcast %cst_11 : f32 to vector<8x128xf32>
    %16 = arith.maximumf %14, %15 : vector<8x128xf32>
    %17 = arith.truncf %16 : vector<8x128xf32> to vector<8x128xbf16>
    %c0_12 = arith.constant 0 : index
    %c0_13 = arith.constant 0 : index
    %18 = vector.load %arg6[%c0_12, %c0_13] : memref<128x8xbf16, #tpu.memory_space<vmem>>, vector<128x8xbf16>
    %cst_14 = arith.constant dense<0.000000e+00> : vector<8x8xf32>
    %19 = tpu.matmul %17, %18, %cst_14 {dimension_numbers = #tpu.dot_dimension_numbers<[1], [0], [0], [1], [0, 0, 1, 1], [], []>} : vector<8x128xbf16>, vector<128x8xbf16>, vector<8x8xf32> -> vector<8x8xf32>
    %c0_15 = arith.constant 0 : index
    %c0_16 = arith.constant 0 : index
    %20 = vector.load %arg7[%c0_15, %c0_16] : memref<1x8xf32, #tpu.memory_space<vmem>>, vector<1x8xf32>
    %21 = vector.broadcast %20 : vector<1x8xf32> to vector<8x8xf32>
    %22 = arith.addf %19, %21 : vector<8x8xf32>
    %cst_17 = arith.constant dense<0xFF800000> : vector<8xf32>
    %23 = vector.multi_reduction <maximumf>, %22, %cst_17 [1] : vector<8x8xf32> to vector<8xf32>
    %24 = vector.shape_cast %23 : vector<8xf32> to vector<8x1xf32>
    %25 = vector.broadcast %24 : vector<8x1xf32> to vector<8x8xf32>
    %26 = arith.subf %22, %25 : vector<8x8xf32>
    %27 = math.exp %26 : vector<8x8xf32>
    %cst_18 = arith.constant dense<0.000000e+00> : vector<8xf32>
    %28 = vector.multi_reduction <add>, %27, %cst_18 [1] : vector<8x8xf32> to vector<8xf32>
    %29 = vector.shape_cast %28 : vector<8xf32> to vector<8x1xf32>
    %30 = vector.broadcast %29 : vector<8x1xf32> to vector<8x8xf32>
    %31 = arith.divf %27, %30 : vector<8x8xf32>
    %c0_19 = arith.constant 0 : index
    %c0_20 = arith.constant 0 : index
    %32 = vector.load %arg8[%c0_19, %c0_20] : memref<8x8xf32, #tpu.memory_space<vmem>>, vector<8x8xf32>
    tpu.vector_store %arg8[%c0_19, %c0_20], %31 {strides = array<i32>} : memref<8x8xf32, #tpu.memory_space<vmem>>, vector<8x8xf32>,
    return
  }
  func.func @transform_0(%arg0: i32) -> (i32, i32) {
    %c0_i32 = arith.constant 0 : i32
    %c0_i32_0 = arith.constant 0 : i32
    return %arg0, %c0_i32 : i32, i32
  }
  func.func @transform_1(%arg0: i32) -> (i32, i32) {
    %c0_i32 = arith.constant 0 : i32
    %c0_i32_0 = arith.constant 0 : i32
    %c0_i32_1 = arith.constant 0 : i32
    return %c0_i32, %c0_i32_0 : i32, i32
  }
  func.func @transform_2(%arg0: i32) -> (i32, i32) {
    %c0_i32 = arith.constant 0 : i32
    %c0_i32_0 = arith.constant 0 : i32
    %c0_i32_1 = arith.constant 0 : i32
    return %c0_i32, %c0_i32_0 : i32, i32
  }
  func.func @transform_3(%arg0: i32) -> (i32, i32) {
    %c0_i32 = arith.constant 0 : i32
    %c0_i32_0 = arith.constant 0 : i32
    %c0_i32_1 = arith.constant 0 : i32
    return %c0_i32, %c0_i32_0 : i32, i32
  }
  func.func @transform_4(%arg0: i32) -> (i32, i32) {
    %c0_i32 = arith.constant 0 : i32
    %c0_i32_0 = arith.constant 0 : i32
    %c0_i32_1 = arith.constant 0 : i32
    return %c0_i32, %c0_i32_0 : i32, i32
  }
  func.func @transform_5(%arg0: i32) -> (i32, i32) {
    %c0_i32 = arith.constant 0 : i32
    %c0_i32_0 = arith.constant 0 : i32
    %c0_i32_1 = arith.constant 0 : i32
    return %c0_i32, %c0_i32_0 : i32, i32
  }
  func.func @transform_6(%arg0: i32) -> (i32, i32) {
    %c0_i32 = arith.constant 0 : i32
    %c0_i32_0 = arith.constant 0 : i32
    %c0_i32_1 = arith.constant 0 : i32
    return %c0_i32, %c0_i32_0 : i32, i32
  }
  func.func @transform_7(%arg0: i32) -> (i32, i32) {
    %c0_i32 = arith.constant 0 : i32
    %c0_i32_0 = arith.constant 0 : i32
    return %arg0, %c0_i32 : i32, i32
  }
}

</mosaic_0001>

<llo_original>
// kernel: mlp_forward.1
$region0: #{mlp_forward.1}
  #allocation0 [shape = 'u32[]', space=smem, size = 0x4, offset = 0x4, fixed_abs, tag = 'smem constant byte address 0x4 - core index']
  #allocation1 [shape = 'u32[144,128]{1,0:T(1,128)}', space=vmem, size = 0x12000, scoped, tag = 'internal scratch']
  %s0 = inlined_call_operand.vmem [shape: f32[8,16], index: 0, kind: input, shape index: {}]
  %s1 = inlined_call_operand.vmem [shape: bf16[16,128], index: 1, kind: input, shape index: {}]
  %s2 = inlined_call_operand.vmem [shape: f32[1,128], index: 2, kind: input, shape index: {}]
  %s3 = inlined_call_operand.vmem [shape: bf16[128,128], index: 3, kind: input, shape index: {}]
  %s4 = inlined_call_operand.vmem [shape: f32[1,128], index: 4, kind: input, shape index: {}]
  %s5 = inlined_call_operand.vmem [shape: bf16[128,8], index: 5, kind: input, shape index: {}]
  %s6 = inlined_call_operand.vmem [shape: f32[1,8], index: 6, kind: input, shape index: {}]
  %s7 = inlined_call_operand.hbm [shape: f32[8,8], index: 7, kind: output, shape index: {}]
  %s8 = sld [smem:[#allocation0]]
  $region38: #{mlp_forward.1} parent=0
    _
  %s10 = ssub.s32 1, %s8
  %s11 = scalar_select 0, %s10, %s8
  $region1: #{mlp_forward.1} parent=0
    #allocation2 [shape = 'u8[4096]{0}', space=vmem, size = 0x1000, scoped, tag = 'output window, operand 0, single buffered']
    #allocation3 [shape = 's32[1]{0}', space=sflag, size = 0x4, scoped, tag = 'scoped memory for mlp_forward.1']
    %12 = vsyncpa [#allocation3], 0
    // Predicated region
    $region2: #{mlp_forward.1} parent=1 // pred_check
      _
    $region3: #{mlp_forward.1} parent=1 // pred_check_branch
      %14 = sbr.rel (0) target = $region5
    $region4: #{mlp_forward.1} parent=1 // pred_region
      _
    $region5: #{mlp_forward.1} parent=1 // pred_fallthru
      _
    // Predicated region
    $region6: #{mlp_forward.1} parent=1 // pred_check
      _
    $region7: #{mlp_forward.1} parent=1 // pred_check_branch
      %16 = sbr.rel (0) target = $region9
    $region8: #{mlp_forward.1} parent=1 // pred_region
      _
    $region9: #{mlp_forward.1} parent=1 // pred_fallthru
      _
    // Predicated region
    $region10: #{mlp_forward.1} parent=1 // pred_check
      _
    $region11: #{mlp_forward.1} parent=1 // pred_check_branch
      %18 = sbr.rel (0) target = $region13
    $region12: #{mlp_forward.1} parent=1 // pred_region
      _
    $region13: #{mlp_forward.1} parent=1 // pred_fallthru
      _
    // Predicated region
    $region14: #{mlp_forward.1} parent=1 // pred_check
      _
    $region15: #{mlp_forward.1} parent=1 // pred_check_branch
      %20 = sbr.rel (0) target = $region17
    $region16: #{mlp_forward.1} parent=1 // pred_region
      _
    $region17: #{mlp_forward.1} parent=1 // pred_fallthru
      _
    // Predicated region
    $region18: #{mlp_forward.1} parent=1 // pred_check
      _
    $region19: #{mlp_forward.1} parent=1 // pred_check_branch
      %22 = sbr.rel (0) target = $region21
    $region20: #{mlp_forward.1} parent=1 // pred_region
      _
    $region21: #{mlp_forward.1} parent=1 // pred_fallthru
      _
    // Predicated region
    $region22: #{mlp_forward.1} parent=1 // pred_check
      _
    $region23: #{mlp_forward.1} parent=1 // pred_check_branch
      %24 = sbr.rel (0) target = $region25
    $region24: #{mlp_forward.1} parent=1 // pred_region
      _
    $region25: #{mlp_forward.1} parent=1 // pred_fallthru
      _
    // Predicated region
    $region26: #{mlp_forward.1} parent=1 // pred_check
      _
    $region27: #{mlp_forward.1} parent=1 // pred_check_branch
      %26 = sbr.rel (0) target = $region29
    $region28: #{mlp_forward.1} parent=1 // pred_region
      _
    $region29: #{mlp_forward.1} parent=1 // pred_fallthru
      _
    %v28 = vld [vmem:[%s0] sm:$0xff]
    %v29 = vpack.c.bf16 %v28, %v28
    %v30 = vld [vmem:[%s1] sm:$0xf]
    %v31 = vld [vmem:[%s1 + $0x4] sm:$0xf]
    %v32 = vld [vmem:[%s2] sm:$0x1]
    %v34 = vlaneseq
    %v35 = vshrl.u32 %v34, 7
    %v36 = vsub.s32 0, %v35
    %v37 = vrot.slane %v32, %v36
    %v41 = vunpack.c.l.b16 %v30
    %v42 = vunpack.c.l.b16 %v31
    %v43 = vpack.c.b16 %v42, %v41
    %vm45 = vcmask 130048
    %v47 = vsel %vm45, %v29, 0
    %49 = vmatprep.subr.bf16.mxu0 0
    %50 = vmatpush1.bf16.msra.mxu0 0
    %51 = vmatprep.subr.bf16.mxu0 0
    %52 = vmatpush1.bf16.msra.mxu0 0
    %53 = vmatprep.subr.bf16.mxu0 0
    %54 = vmatpush1.bf16.msra.mxu0 0
    %55 = vmatprep.subr.bf16.mxu0 0
    %56 = vmatpush1.bf16.msra.mxu0 0
    %57 = vmatprep.subr.bf16.mxu0 0
    %58 = vmatpush1.bf16.msra.mxu0 0
    %59 = vmatprep.subr.bf16.mxu0 0
    %60 = vmatpush1.bf16.msra.mxu0 0
    %61 = vmatprep.subr.bf16.mxu0 0
    %62 = vmatpush1.bf16.msra.mxu0 0
    %63 = vmatprep.subr.bf16.mxu0 0
    %64 = vmatpush1.bf16.msra.mxu0 %v43
    %65 = vmatprep.subr.bf16.mxu0 0
    %66 = vmatpush2.bf16.msra.mxu0 0
    %67 = vmatprep.subr.bf16.mxu0 0
    %68 = vmatpush2.bf16.msra.mxu0 0
    %69 = vmatprep.subr.bf16.mxu0 0
    %70 = vmatpush2.bf16.msra.mxu0 0
    %71 = vmatprep.subr.bf16.mxu0 0
    %72 = vmatpush2.bf16.msra.mxu0 0
    %73 = vmatprep.subr.bf16.mxu0 0
    %74 = vmatpush2.bf16.msra.mxu0 0
    %75 = vmatprep.subr.bf16.mxu0 0
    %76 = vmatpush2.bf16.msra.mxu0 0
    %77 = vmatprep.subr.bf16.mxu0 0
    %78 = vmatpush2.bf16.msra.mxu0 0
    %79 = vmatprep.subr.bf16.mxu0 0
    %80 = vmatpush2.bf16.msra.mxu0 0
    %81 = vmatprep.mubr.bf16.mxu0 0
    %82 = vmatmul.mubr.bf16.gmra.mxu0 %v47
    %v83 = vpop.f32.mrf.mxu0
    %v84 = vadd.f32 %v37, %v83
    %v85 = vpop.f32.mrf.mxu0
    %v86 = vpop.f32.mrf.mxu0
    %v87 = vpop.f32.mrf.mxu0
    %88 = vdwg.mxu0
    %v89 = vmax.f32 %v84, 0.0
    %v90 = vpack.c.bf16 %v89, %v89
    %v91 = vld [vmem:[%s3] sm:$0xf]
    %v92 = vld [vmem:[%s3 + $0x4] sm:$0xf]
    %v93 = vld [vmem:[%s3 + $0x8] sm:$0xf]
    %v94 = vld [vmem:[%s3 + $0xc] sm:$0xf]
    %v95 = vld [vmem:[%s3 + $0x10] sm:$0xf]
    %v96 = vld [vmem:[%s3 + $0x14] sm:$0xf]
    %v97 = vld [vmem:[%s3 + $0x18] sm:$0xf]
    %v98 = vld [vmem:[%s3 + $0x1c] sm:$0xf]
    %v99 = vld [vmem:[%s3 + $0x20] sm:$0xf]
    %v100 = vld [vmem:[%s3 + $0x24] sm:$0xf]
    %v101 = vld [vmem:[%s3 + $0x28] sm:$0xf]
    %v102 = vld [vmem:[%s3 + $0x2c] sm:$0xf]
    %v103 = vld [vmem:[%s3 + $0x30] sm:$0xf]
    %v104 = vld [vmem:[%s3 + $0x34] sm:$0xf]
    %v105 = vld [vmem:[%s3 + $0x38] sm:$0xf]
    %v106 = vld [vmem:[%s3 + $0x3c] sm:$0xf]
    %v107 = vld [vmem:[%s4] sm:$0x1]
    %v109 = vlaneseq
    %v110 = vshrl.u32 %v109, 7
    %v111 = vsub.s32 0, %v110
    %v112 = vrot.slane %v107, %v111
    %v130 = vunpack.c.l.b16 %v91
    %v131 = vunpack.c.l.b16 %v92
    %v132 = vunpack.c.l.b16 %v93
    %v133 = vunpack.c.l.b16 %v94
    %v134 = vunpack.c.l.b16 %v95
    %v135 = vunpack.c.l.b16 %v96
    %v136 = vunpack.c.l.b16 %v97
    %v137 = vunpack.c.l.b16 %v98
    %v138 = vunpack.c.l.b16 %v99
    %v139 = vunpack.c.l.b16 %v100
    %v140 = vunpack.c.l.b16 %v101
    %v141 = vunpack.c.l.b16 %v102
    %v142 = vunpack.c.l.b16 %v103
    %v143 = vunpack.c.l.b16 %v104
    %v144 = vunpack.c.l.b16 %v105
    %v145 = vunpack.c.l.b16 %v106
    %v146 = vpack.c.b16 %v131, %v130
    %v147 = vpack.c.b16 %v133, %v132
    %v148 = vpack.c.b16 %v135, %v134
    %v149 = vpack.c.b16 %v137, %v136
    %v150 = vpack.c.b16 %v139, %v138
    %v151 = vpack.c.b16 %v141, %v140
    %v152 = vpack.c.b16 %v143, %v142
    %v153 = vpack.c.b16 %v145, %v144
    %162 = vmatprep.subr.bf16.mxu0 0
    %163 = vmatpush1.bf16.msra.mxu0 %v153
    %164 = vmatprep.subr.bf16.mxu0 0
    %165 = vmatpush1.bf16.msra.mxu0 %v152
    %166 = vmatprep.subr.bf16.mxu0 0
    %167 = vmatpush1.bf16.msra.mxu0 %v151
    %168 = vmatprep.subr.bf16.mxu0 0
    %169 = vmatpush1.bf16.msra.mxu0 %v150
    %170 = vmatprep.subr.bf16.mxu0 0
    %171 = vmatpush1.bf16.msra.mxu0 %v149
    %172 = vmatprep.subr.bf16.mxu0 0
    %173 = vmatpush1.bf16.msra.mxu0 %v148
    %174 = vmatprep.subr.bf16.mxu0 0
    %175 = vmatpush1.bf16.msra.mxu0 %v147
    %176 = vmatprep.subr.bf16.mxu0 0
    %177 = vmatpush1.bf16.msra.mxu0 %v146
    %178 = vmatprep.subr.bf16.mxu0 0
    %179 = vmatpush2.bf16.msra.mxu0 0
    %180 = vmatprep.subr.bf16.mxu0 0
    %181 = vmatpush2.bf16.msra.mxu0 0
    %182 = vmatprep.subr.bf16.mxu0 0
    %183 = vmatpush2.bf16.msra.mxu0 0
    %184 = vmatprep.subr.bf16.mxu0 0
    %185 = vmatpush2.bf16.msra.mxu0 0
    %186 = vmatprep.subr.bf16.mxu0 0
    %187 = vmatpush2.bf16.msra.mxu0 0
    %188 = vmatprep.subr.bf16.mxu0 0
    %189 = vmatpush2.bf16.msra.mxu0 0
    %190 = vmatprep.subr.bf16.mxu0 0
    %191 = vmatpush2.bf16.msra.mxu0 0
    %192 = vmatprep.subr.bf16.mxu0 0
    %193 = vmatpush2.bf16.msra.mxu0 0
    %194 = vmatprep.mubr.bf16.mxu0 0
    %195 = vmatmul.mubr.bf16.gmra.mxu0 %v90
    %v196 = vpop.f32.mrf.mxu0
    %v197 = vadd.f32 %v112, %v196
    %v198 = vpop.f32.mrf.mxu0
    %v199 = vpop.f32.mrf.mxu0
    %v200 = vpop.f32.mrf.mxu0
    %201 = vdwg.mxu0
    %v202 = vmax.f32 %v197, 0.0
    %v203 = vpack.c.bf16 %v202, %v202
    %v204 = vld [vmem:[%s5] sm:$0xf]
    %v205 = vld [vmem:[%s5 + $0x4] sm:$0xf]
    %v206 = vld [vmem:[%s5 + $0x8] sm:$0xf]
    %v207 = vld [vmem:[%s5 + $0xc] sm:$0xf]
    %v208 = vld [vmem:[%s5 + $0x10] sm:$0xf]
    %v209 = vld [vmem:[%s5 + $0x14] sm:$0xf]
    %v210 = vld [vmem:[%s5 + $0x18] sm:$0xf]
    %v211 = vld [vmem:[%s5 + $0x1c] sm:$0xf]
    %v212 = vld [vmem:[%s5 + $0x20] sm:$0xf]
    %v213 = vld [vmem:[%s5 + $0x24] sm:$0xf]
    %v214 = vld [vmem:[%s5 + $0x28] sm:$0xf]
    %v215 = vld [vmem:[%s5 + $0x2c] sm:$0xf]
    %v216 = vld [vmem:[%s5 + $0x30] sm:$0xf]
    %v217 = vld [vmem:[%s5 + $0x34] sm:$0xf]
    %v218 = vld [vmem:[%s5 + $0x38] sm:$0xf]
    %v219 = vld [vmem:[%s5 + $0x3c] sm:$0xf]
    %v220 = vld [vmem:[%s6] sm:$0x1]
    %v222 = vlaneseq
    %v223 = vshrl.u32 %v222, 7
    %v224 = vsub.s32 0, %v223
    %v225 = vrot.slane %v220, %v224
    %v243 = vunpack.c.l.b16 %v204
    %v244 = vunpack.c.l.b16 %v205
    %v245 = vunpack.c.l.b16 %v206
    %v246 = vunpack.c.l.b16 %v207
    %v247 = vunpack.c.l.b16 %v208
    %v248 = vunpack.c.l.b16 %v209
    %v249 = vunpack.c.l.b16 %v210
    %v250 = vunpack.c.l.b16 %v211
    %v251 = vunpack.c.l.b16 %v212
    %v252 = vunpack.c.l.b16 %v213
    %v253 = vunpack.c.l.b16 %v214
    %v254 = vunpack.c.l.b16 %v215
    %v255 = vunpack.c.l.b16 %v216
    %v256 = vunpack.c.l.b16 %v217
    %v257 = vunpack.c.l.b16 %v218
    %v258 = vunpack.c.l.b16 %v219
    %v259 = vpack.c.b16 %v244, %v243
    %v260 = vpack.c.b16 %v246, %v245
    %v261 = vpack.c.b16 %v248, %v247
    %v262 = vpack.c.b16 %v250, %v249
    %v263 = vpack.c.b16 %v252, %v251
    %v264 = vpack.c.b16 %v254, %v253
    %v265 = vpack.c.b16 %v256, %v255
    %v266 = vpack.c.b16 %v258, %v257
    %275 = vmatprep.subr.bf16.mxu0 0
    %276 = vmatpush1.bf16.msra.mxu0 %v266
    %277 = vmatprep.subr.bf16.mxu0 0
    %278 = vmatpush1.bf16.msra.mxu0 %v265
    %279 = vmatprep.subr.bf16.mxu0 0
    %280 = vmatpush1.bf16.msra.mxu0 %v264
    %281 = vmatprep.subr.bf16.mxu0 0
    %282 = vmatpush1.bf16.msra.mxu0 %v263
    %283 = vmatprep.subr.bf16.mxu0 0
    %284 = vmatpush1.bf16.msra.mxu0 %v262
    %285 = vmatprep.subr.bf16.mxu0 0
    %286 = vmatpush1.bf16.msra.mxu0 %v261
    %287 = vmatprep.subr.bf16.mxu0 0
    %288 = vmatpush1.bf16.msra.mxu0 %v260
    %289 = vmatprep.subr.bf16.mxu0 0
    %290 = vmatpush1.bf16.msra.mxu0 %v259
    %291 = vmatprep.subr.bf16.mxu0 0
    %292 = vmatpush2.bf16.msra.mxu0 0
    %293 = vmatprep.subr.bf16.mxu0 0
    %294 = vmatpush2.bf16.msra.mxu0 0
    %295 = vmatprep.subr.bf16.mxu0 0
    %296 = vmatpush2.bf16.msra.mxu0 0
    %297 = vmatprep.subr.bf16.mxu0 0
    %298 = vmatpush2.bf16.msra.mxu0 0
    %299 = vmatprep.subr.bf16.mxu0 0
    %300 = vmatpush2.bf16.msra.mxu0 0
    %301 = vmatprep.subr.bf16.mxu0 0
    %302 = vmatpush2.bf16.msra.mxu0 0
    %303 = vmatprep.subr.bf16.mxu0 0
    %304 = vmatpush2.bf16.msra.mxu0 0
    %305 = vmatprep.subr.bf16.mxu0 0
    %306 = vmatpush2.bf16.msra.mxu0 0
    %307 = vmatprep.mubr.bf16.mxu0 0
    %308 = vmatmul.mubr.bf16.gmra.mxu0 %v203
    %v309 = vpop.f32.mrf.mxu0
    %v310 = vadd.f32 %v225, %v309
    %v311 = vpop.f32.mrf.mxu0
    %v312 = vpop.f32.mrf.mxu0
    %v313 = vpop.f32.mrf.mxu0
    %314 = vdwg.mxu0
    %vm315 = vcmask 64512
    %v316 = vsel %vm315, %v310, -inf
    %317 = vmax.xlane.f32.xlu0 %v316
    %v318 = vpop.xlane.xlu0 %317
    %v319 = vsub.f32 %v310, %v318
    %v320 = vmul.f32 %v319, 1.442695
    %v321 = vpow.pop %v320
    %v322 = vsel %vm315, %v321, 0.0
    %323 = vadd.xlane.f32.xlu0 %v322
    %v324 = vpop.xlane.xlu0 %323
    %v325 = vrcp.pop %v324
    %v326 = vmul.f32 %v321, %v325
    %327 = vst.msk [vmem:[#allocation2] sm:$0xff] %vm315, %v326
    // Predicated region
    $region30: #{mlp_forward.1} parent=1 // pred_check
      _
    $region31: #{mlp_forward.1} parent=1 // pred_check_branch
      %329 = sbr.rel (0) target = $region33
    $region32: #{mlp_forward.1} parent=1 // pred_region
      %s331 = ssub.s32 128, 128
      %332 = vsyncadd [#allocation3], %s331
      %s334 = sshll.u32 [#allocation2], 4
      %s335 = int_to_ptr.vmem [resolvable:$true] %s334
      %337 = dma.vmem_to_hbm [thread:$0]  %s335, 128, %s7, [#allocation3]
    $region33: #{mlp_forward.1} parent=1 // pred_fallthru
      _
    // Predicated region
    $region34: #{mlp_forward.1} parent=1 // pred_check
      _
    $region35: #{mlp_forward.1} parent=1 // pred_check_branch
      %339 = sbr.rel (0) target = $region37
    $region36: #{mlp_forward.1} parent=1 // pred_region
      %340 = dma.done [#allocation3], 128
    $region37: #{mlp_forward.1} parent=1 // pred_fallthru
      _
    %341 = vsyncpa [#allocation3], 1

</llo_original>
